<compile_context>
chip_gen: v7x
topology: tpu7x:2x2x1
jax: 0.10.0
libtpu: 0.0.40
codegen_flags: <defaults>
</compile_context>

<pallas_src>
import jax
import jax.numpy as jnp
from jax import lax
from jax.experimental import pallas as pl
from jax.experimental.pallas import tpu as pltpu


def _mlp_kernel(x_ref, w1_ref, b1_ref, w2_ref, b2_ref, o_ref):
    # x_ref : [TILE_B, F] f32  (natural [batch, feature] layout, no wrapper transpose)
    # w1_ref: [H, F] f32       b1_ref: [H, 1] f32
    # w2_ref: [O, H] f32       b2_ref: [O, 1] f32
    # o_ref : [O, TILE_B] f32  (batch on the lane axis -> dense, unmasked vst)
    x = x_ref[...]
    # h = W1 @ x^T : contract the feature axis of both operands (A @ B.T form).
    # Keeps batch on the lane axis without materializing a transposed copy of x.
    h = lax.dot_general(
        w1_ref[...], x,
        dimension_numbers=(((1,), (1,)), ((), ())),
        preferred_element_type=jnp.float32,
    )                                                    # [H, TILE_B]
    h = jnp.maximum(h + b1_ref[...], 0.0)                # bias + ReLU in f32 (VPU)
    o = jnp.dot(w2_ref[...], h,
                preferred_element_type=jnp.float32) + b2_ref[...]   # [O, TILE_B]
    o_ref[...] = o.astype(o_ref.dtype)


def my_cnn_forward(x, w1, b1, w2, b2, *, tile_b=32768):
    """x: [B, F] f32.  PyTorch-layout weights: w1 [16, F], b1 [16], w2 [3, 16], b2 [3]."""
    B, F = x.shape
    H = w1.shape[0]
    O = w2.shape[0]

    # Pad the batch only to a multiple of 128 lanes (NOT to a full tile multiple,
    # and with no transpose/cast copy) -> HBM traffic stays ~proportional to B.
    B_pad = ((B + 127) // 128) * 128
    x_in = x if B_pad == B else jnp.pad(x, ((0, B_pad - B), (0, 0)))

    # Tile sizing: large tiles amortize the ~0.35us/grid-step overhead. Clamp to the
    # (padded) batch, keep a multiple of 128, and aim for n_tiles >= 2 so the
    # "parallel" batch axis can span both TensorCores on v7x (neutral on v5e/v6e).
    tile_b = min(int(tile_b), B_pad)
    if tile_b == B_pad and B_pad >= 256:
        tile_b = ((B_pad // 2 + 127) // 128) * 128
    tile_b = max(128, (tile_b // 128) * 128)
    n_tiles = pl.cdiv(B_pad, tile_b)

    # VMEM budget (f32): 2x double-buffered x tile + 2x out tile + h intermediates
    # ~= 600 B per batch column, plus slack. Cap below v7x's 64 MiB physical VMEM;
    # the floor lifts v5e's 16 MiB scoped default.
    vmem_limit = int(min(max(tile_b * 600 + (4 << 20), 32 << 20), 60 << 20))

    out_t = pl.pallas_call(
        _mlp_kernel,
        out_shape=jax.ShapeDtypeStruct((O, B_pad), jnp.float32),
        grid_spec=pltpu.PrefetchScalarGridSpec(
            num_scalar_prefetch=0,
            grid=(n_tiles,),
            in_specs=[
                pl.BlockSpec((tile_b, F), lambda i: (i, 0)),   # streamed x tile (double-buffered)
                pl.BlockSpec((H, F), lambda i: (0, 0)),        # weights/biases: VMEM-resident
                pl.BlockSpec((H, 1), lambda i: (0, 0)),
                pl.BlockSpec((O, H), lambda i: (0, 0)),
                pl.BlockSpec((O, 1), lambda i: (0, 0)),
            ],
            out_specs=pl.BlockSpec((O, tile_b), lambda i: (0, i)),  # lane-dense output tile
        ),
        compiler_params=pltpu.CompilerParams(
            dimension_semantics=("parallel",),    # batch tiles shard across TCs (v7x)
            vmem_limit_bytes=vmem_limit,
        ),
    )(
        x_in,
        w1.astype(jnp.float32),
        b1.reshape(H, 1).astype(jnp.float32),
        w2.astype(jnp.float32),
        b2.reshape(O, 1).astype(jnp.float32),
    )

    # TODO(synk): a consumer that accepts [3, B] (or fuses this transpose) saves one
    # more XLA pass over the (small) output stream.
    return out_t[:, :B].T


def init_params(key, num_feat=42):
    """Deterministic init matching nn.Linear (weights stored as [out, in])."""
    k1, k2, k3, k4 = jax.random.split(key, 4)
    lim1 = 1.0 / jnp.sqrt(float(num_feat))
    w1 = jax.random.uniform(k1, (16, num_feat), jnp.float32, -lim1, lim1)
    b1 = jax.random.uniform(k2, (16,), jnp.float32, -lim1, lim1)
    lim2 = 1.0 / jnp.sqrt(16.0)
    w2 = jax.random.uniform(k3, (3, 16), jnp.float32, -lim2, lim2)
    b2 = jax.random.uniform(k4, (3,), jnp.float32, -lim2, lim2)
    return w1, b1, w2, b2


if __name__ == "__main__":
    num_feat = 42
    batch = 8

    key = jax.random.PRNGKey(0)
    kx, kp = jax.random.split(key)
    x = jax.random.normal(kx, (batch, num_feat), jnp.float32)
    w1, b1, w2, b2 = init_params(kp, num_feat)

    out = my_cnn_forward(x, w1, b1, w2, b2)
    out = jax.block_until_ready(out)

    # plain-JAX f32 reference (kernel is f32 end-to-end with f32 accumulation)
    ref = jnp.maximum(x @ w1.T + b1, 0.0) @ w2.T + b2
    assert out.shape == (batch, 3), out.shape
    assert jnp.allclose(out, ref, atol=1e-2, rtol=1e-2), float(jnp.max(jnp.abs(out - ref)))

    print("KERNEL_OK")
</pallas_src>

<mosaic_0001>
module attributes {stable_mosaic.version = 11 : i64} {
  func.func @_mlp_kernel(%arg0: i32, %arg1: memref<128x42xf32, #tpu.memory_space<vmem>>, %arg2: memref<16x42xf32, #tpu.memory_space<vmem>>, %arg3: memref<16x1xf32, #tpu.memory_space<vmem>>, %arg4: memref<3x16xf32, #tpu.memory_space<vmem>>, %arg5: memref<3x1xf32, #tpu.memory_space<vmem>>, %arg6: memref<3x128xf32, #tpu.memory_space<vmem>>) attributes {dimension_semantics = [#tpu.dimension_semantics<parallel>], iteration_bounds = array<i64: 1>, scalar_prefetch = 0 : i64, scratch_operands = 0 : i64, tpu.core_type = #tpu.core_type<tc>, window_params = [{transform_indices = @transform_0, window_bounds = array<i64: 128, 42>}, {pipeline_mode = #tpu.pipeline_mode<synchronous>, transform_indices = @transform_1, window_bounds = array<i64: 16, 42>}, {pipeline_mode = #tpu.pipeline_mode<synchronous>, transform_indices = @transform_2, window_bounds = array<i64: 16, 1>}, {pipeline_mode = #tpu.pipeline_mode<synchronous>, transform_indices = @transform_3, window_bounds = array<i64: 3, 16>}, {pipeline_mode = #tpu.pipeline_mode<synchronous>, transform_indices = @transform_4, window_bounds = array<i64: 3, 1>}, {transform_indices = @transform_5, window_bounds = array<i64: 3, 128>}]} {
    %c0 = arith.constant 0 : index
    %c0_0 = arith.constant 0 : index
    %0 = vector.load %arg1[%c0, %c0_0] : memref<128x42xf32, #tpu.memory_space<vmem>>, vector<128x42xf32>
    %c0_1 = arith.constant 0 : index
    %c0_2 = arith.constant 0 : index
    %1 = vector.load %arg2[%c0_1, %c0_2] : memref<16x42xf32, #tpu.memory_space<vmem>>, vector<16x42xf32>
    %cst = arith.constant dense<0.000000e+00> : vector<16x128xf32>
    %2 = tpu.matmul %1, %0, %cst {dimension_numbers = #tpu.dot_dimension_numbers<[1], [1], [0], [0], [0, 0, 1, 0], [], []>} : vector<16x42xf32>, vector<128x42xf32>, vector<16x128xf32> -> vector<16x128xf32>
    %c0_3 = arith.constant 0 : index
    %c0_4 = arith.constant 0 : index
    %3 = vector.load %arg3[%c0_3, %c0_4] : memref<16x1xf32, #tpu.memory_space<vmem>>, vector<16x1xf32>
    %4 = vector.broadcast %3 : vector<16x1xf32> to vector<16x128xf32>
    %5 = arith.addf %2, %4 : vector<16x128xf32>
    %cst_5 = arith.constant 0.000000e+00 : f32
    %6 = vector.broadcast %cst_5 : f32 to vector<16x128xf32>
    %7 = arith.maximumf %5, %6 : vector<16x128xf32>
    %c0_6 = arith.constant 0 : index
    %c0_7 = arith.constant 0 : index
    %8 = vector.load %arg4[%c0_6, %c0_7] : memref<3x16xf32, #tpu.memory_space<vmem>>, vector<3x16xf32>
    %cst_8 = arith.constant dense<0.000000e+00> : vector<3x128xf32>
    %9 = tpu.matmul %8, %7, %cst_8 {dimension_numbers = #tpu.dot_dimension_numbers<[1], [0], [0], [1], [0, 0, 1, 1], [], []>} : vector<3x16xf32>, vector<16x128xf32>, vector<3x128xf32> -> vector<3x128xf32>
    %c0_9 = arith.constant 0 : index
    %c0_10 = arith.constant 0 : index
    %10 = vector.load %arg5[%c0_9, %c0_10] : memref<3x1xf32, #tpu.memory_space<vmem>>, vector<3x1xf32>
    %11 = vector.broadcast %10 : vector<3x1xf32> to vector<3x128xf32>
    %12 = arith.addf %9, %11 : vector<3x128xf32>
    %c0_11 = arith.constant 0 : index
    %c0_12 = arith.constant 0 : index
    %13 = vector.load %arg6[%c0_11, %c0_12] : memref<3x128xf32, #tpu.memory_space<vmem>>, vector<3x128xf32>
    tpu.vector_store %arg6[%c0_11, %c0_12], %12 {strides = array<i32>} : memref<3x128xf32, #tpu.memory_space<vmem>>, vector<3x128xf32>,
    return
  }
  func.func @transform_0(%arg0: i32) -> (i32, i32) {
    %c0_i32 = arith.constant 0 : i32
    %c0_i32_0 = arith.constant 0 : i32
    return %arg0, %c0_i32 : i32, i32
  }
  func.func @transform_1(%arg0: i32) -> (i32, i32) {
    %c0_i32 = arith.constant 0 : i32
    %c0_i32_0 = arith.constant 0 : i32
    %c0_i32_1 = arith.constant 0 : i32
    return %c0_i32, %c0_i32_0 : i32, i32
  }
  func.func @transform_2(%arg0: i32) -> (i32, i32) {
    %c0_i32 = arith.constant 0 : i32
    %c0_i32_0 = arith.constant 0 : i32
    %c0_i32_1 = arith.constant 0 : i32
    return %c0_i32, %c0_i32_0 : i32, i32
  }
  func.func @transform_3(%arg0: i32) -> (i32, i32) {
    %c0_i32 = arith.constant 0 : i32
    %c0_i32_0 = arith.constant 0 : i32
    %c0_i32_1 = arith.constant 0 : i32
    return %c0_i32, %c0_i32_0 : i32, i32
  }
  func.func @transform_4(%arg0: i32) -> (i32, i32) {
    %c0_i32 = arith.constant 0 : i32
    %c0_i32_0 = arith.constant 0 : i32
    %c0_i32_1 = arith.constant 0 : i32
    return %c0_i32, %c0_i32_0 : i32, i32
  }
  func.func @transform_5(%arg0: i32) -> (i32, i32) {
    %c0_i32 = arith.constant 0 : i32
    %c0_i32_0 = arith.constant 0 : i32
    return %c0_i32, %arg0 : i32, i32
  }
}

</mosaic_0001>

<llo_original>
// kernel: tpu_custom_call.1
$region0: #{tpu_custom_call.1}
  #allocation0 [shape = 'u32[]', space=smem, size = 0x4, offset = 0x4, fixed_abs, tag = 'smem constant byte address 0x4 - core index']
  #allocation1 [shape = 'u32[144,128]{1,0:T(1,128)}', space=vmem, size = 0x12000, scoped, tag = 'internal scratch']
  %s0 = inlined_call_operand.vmem [shape: f32[128,42], index: 0, kind: input, shape index: {}]
  %s1 = inlined_call_operand.vmem [shape: f32[16,42], index: 1, kind: input, shape index: {}]
  %s2 = inlined_call_operand.vmem [shape: f32[16,1], index: 2, kind: input, shape index: {}]
  %s3 = inlined_call_operand.vmem [shape: f32[3,16], index: 3, kind: input, shape index: {}]
  %s4 = inlined_call_operand.vmem [shape: f32[3,1], index: 4, kind: input, shape index: {}]
  %s5 = inlined_call_operand.hbm [shape: f32[3,128], index: 5, kind: output, shape index: {}]
  %s6 = sld [smem:[#allocation0]]
  $region30: #{tpu_custom_call.1} parent=0
    _
  %s8 = ssub.s32 1, %s6
  %s9 = scalar_select 0, %s8, %s6
  $region1: #{tpu_custom_call.1} parent=0
    #allocation2 [shape = 'u8[2048]{0}', space=vmem, size = 0x800, scoped, tag = 'output window, operand 0, single buffered']
    #allocation3 [shape = 's32[1]{0}', space=sflag, size = 0x4, scoped, tag = 'scoped memory for tpu_custom_call.1']
    %10 = vsyncpa [#allocation3], 0
    // Predicated region
    $region2: #{tpu_custom_call.1} parent=1 // pred_check
      _
    $region3: #{tpu_custom_call.1} parent=1 // pred_check_branch
      %12 = sbr.rel (0) target = $region5
    $region4: #{tpu_custom_call.1} parent=1 // pred_region
      _
    $region5: #{tpu_custom_call.1} parent=1 // pred_fallthru
      _
    // Predicated region
    $region6: #{tpu_custom_call.1} parent=1 // pred_check
      _
    $region7: #{tpu_custom_call.1} parent=1 // pred_check_branch
      %14 = sbr.rel (0) target = $region9
    $region8: #{tpu_custom_call.1} parent=1 // pred_region
      _
    $region9: #{tpu_custom_call.1} parent=1 // pred_fallthru
      _
    // Predicated region
    $region10: #{tpu_custom_call.1} parent=1 // pred_check
      _
    $region11: #{tpu_custom_call.1} parent=1 // pred_check_branch
      %16 = sbr.rel (0) target = $region13
    $region12: #{tpu_custom_call.1} parent=1 // pred_region
      _
    $region13: #{tpu_custom_call.1} parent=1 // pred_fallthru
      _
    // Predicated region
    $region14: #{tpu_custom_call.1} parent=1 // pred_check
      _
    $region15: #{tpu_custom_call.1} parent=1 // pred_check_branch
      %18 = sbr.rel (0) target = $region17
    $region16: #{tpu_custom_call.1} parent=1 // pred_region
      _
    $region17: #{tpu_custom_call.1} parent=1 // pred_fallthru
      _
    // Predicated region
    $region18: #{tpu_custom_call.1} parent=1 // pred_check
      _
    $region19: #{tpu_custom_call.1} parent=1 // pred_check_branch
      %20 = sbr.rel (0) target = $region21
    $region20: #{tpu_custom_call.1} parent=1 // pred_region
      _
    $region21: #{tpu_custom_call.1} parent=1 // pred_fallthru
      _
    %v21 = vld [vmem:[%s0] sm:$0xff]
    %v22 = vld [vmem:[%s0 + $0x8] sm:$0xff]
    %v23 = vld [vmem:[%s0 + $0x10] sm:$0xff]
    %v24 = vld [vmem:[%s0 + $0x18] sm:$0xff]
    %v25 = vld [vmem:[%s0 + $0x20] sm:$0xff]
    %v26 = vld [vmem:[%s0 + $0x28] sm:$0xff]
    %v27 = vld [vmem:[%s0 + $0x30] sm:$0xff]
    %v28 = vld [vmem:[%s0 + $0x38] sm:$0xff]
    %v29 = vld [vmem:[%s0 + $0x40] sm:$0xff]
    %v30 = vld [vmem:[%s0 + $0x48] sm:$0xff]
    %v31 = vld [vmem:[%s0 + $0x50] sm:$0xff]
    %v32 = vld [vmem:[%s0 + $0x58] sm:$0xff]
    %v33 = vld [vmem:[%s0 + $0x60] sm:$0xff]
    %v34 = vld [vmem:[%s0 + $0x68] sm:$0xff]
    %v35 = vld [vmem:[%s0 + $0x70] sm:$0xff]
    %v36 = vld [vmem:[%s0 + $0x78] sm:$0xff]
    %v37 = vld [vmem:[%s1] sm:$0xff]
    %v38 = vld [vmem:[%s1 + $0x8] sm:$0xff]
    %v39 = vld [vmem:[%s2] sm:$0xff]
    %v40 = vld [vmem:[%s2 + $0x8] sm:$0xff]
    %42 = vset.pattern.permute.xlu0 0
    %43 = vperm.xlu0 %42, %v39
    %v44 = vpop.permute.xlu0 %43
    %47 = vset.pattern.permute.xlu0 0
    %48 = vperm.xlu0 %47, %v40
    %v49 = vpop.permute.xlu0 %48
    %vm51 = vcmask 343040
    %v53 = vsel %vm51, %v37, 0
    %v56 = vsel %vm51, %v38, 0
    %v59 = vsel %vm51, %v21, 0
    %v62 = vsel %vm51, %v22, 0
    %v65 = vsel %vm51, %v23, 0
    %v68 = vsel %vm51, %v24, 0
    %v71 = vsel %vm51, %v25, 0
    %v74 = vsel %vm51, %v26, 0
    %v77 = vsel %vm51, %v27, 0
    %v80 = vsel %vm51, %v28, 0
    %v83 = vsel %vm51, %v29, 0
    %v86 = vsel %vm51, %v30, 0
    %v89 = vsel %vm51, %v31, 0
    %v92 = vsel %vm51, %v32, 0
    %v95 = vsel %vm51, %v33, 0
    %v98 = vsel %vm51, %v34, 0
    %v101 = vsel %vm51, %v35, 0
    %v104 = vsel %vm51, %v36, 0
    %106 = vmatprep.subr.mxu0 0.0
    %107 = vmatpush1.xpose.msra.mxu0 %v59
    %108 = vmatprep.subr.mxu0 0.0
    %109 = vmatpush1.xpose.msra.mxu0 %v62
    %110 = vmatprep.subr.mxu0 0.0
    %111 = vmatpush1.xpose.msra.mxu0 %v65
    %112 = vmatprep.subr.mxu0 0.0
    %113 = vmatpush1.xpose.msra.mxu0 %v68
    %114 = vmatprep.subr.mxu0 0.0
    %115 = vmatpush1.xpose.msra.mxu0 %v71
    %116 = vmatprep.subr.mxu0 0.0
    %117 = vmatpush1.xpose.msra.mxu0 %v74
    %118 = vmatprep.subr.mxu0 0.0
    %119 = vmatpush1.xpose.msra.mxu0 %v77
    %120 = vmatprep.subr.mxu0 0.0
    %121 = vmatpush1.xpose.msra.mxu0 %v80
    %122 = vmatprep.subr.mxu0 0.0
    %123 = vmatpush1.xpose.msra.mxu0 %v83
    %124 = vmatprep.subr.mxu0 0.0
    %125 = vmatpush1.xpose.msra.mxu0 %v86
    %126 = vmatprep.subr.mxu0 0.0
    %127 = vmatpush1.xpose.msra.mxu0 %v89
    %128 = vmatprep.subr.mxu0 0.0
    %129 = vmatpush1.xpose.msra.mxu0 %v92
    %130 = vmatprep.subr.mxu0 0.0
    %131 = vmatpush1.xpose.msra.mxu0 %v95
    %132 = vmatprep.subr.mxu0 0.0
    %133 = vmatpush1.xpose.msra.mxu0 %v98
    %134 = vmatprep.subr.mxu0 0.0
    %135 = vmatpush1.xpose.msra.mxu0 %v101
    %136 = vmatprep.subr.mxu0 0.0
    %137 = vmatpush1.xpose.msra.mxu0 %v104
    %138 = vmatprep.subr.mxu0 0.0
    %139 = vmatpush1.xpose.msra.mxu0 0.0
    %140 = vmatprep.subr.mxu0 0.0
    %141 = vmatpush1.xpose.msra.mxu0 0.0
    %142 = vmatprep.subr.mxu0 0.0
    %143 = vmatpush1.xpose.msra.mxu0 0.0
    %144 = vmatprep.subr.mxu0 0.0
    %145 = vmatpush1.xpose.msra.mxu0 0.0
    %146 = vmatprep.subr.mxu0 0.0
    %147 = vmatpush1.xpose.msra.mxu0 0.0
    %148 = vmatprep.subr.mxu0 0.0
    %149 = vmatpush1.xpose.msra.mxu0 0.0
    %150 = vmatprep.subr.mxu0 0.0
    %151 = vmatpush1.xpose.msra.mxu0 0.0
    %152 = vmatprep.subr.mxu0 0.0
    %153 = vmatpush1.xpose.msra.mxu0 0.0
    %154 = vmatprep.subr.mxu0 0.0
    %155 = vmatpush1.xpose.msra.mxu0 0.0
    %156 = vmatprep.subr.mxu0 0.0
    %157 = vmatpush1.xpose.msra.mxu0 0.0
    %158 = vmatprep.subr.mxu0 0.0
    %159 = vmatpush1.xpose.msra.mxu0 0.0
    %160 = vmatprep.subr.mxu0 0.0
    %161 = vmatpush1.xpose.msra.mxu0 0.0
    %162 = vmatprep.subr.mxu0 0.0
    %163 = vmatpush1.xpose.msra.mxu0 0.0
    %164 = vmatprep.subr.mxu0 0.0
    %165 = vmatpush1.xpose.msra.mxu0 0.0
    %166 = vmatprep.subr.mxu0 0.0
    %167 = vmatpush1.xpose.msra.mxu0 0.0
    %168 = vmatprep.subr.mxu0 0.0
    %169 = vmatpush1.xpose.msra.mxu0 0.0
    %170 = vmatprep.mubr.f32.mxu0 0.0
    %171 = vmatmul.mubr.f32.gmra.mrb[0].mxu0 %v53
    %v172 = vpop.f32.mrb[0].mxu0
    %v173 = vadd.f32 %v44, %v172
    %v174 = vpop.f32.mrb[0].mxu0
    %175 = vmatprep.mubr.f32.mxu0 0.0
    %176 = vmatmul.mubr.f32.gmra.mrb[0].mxu0 %v56
    %v177 = vpop.f32.mrb[0].mxu0
    %v178 = vadd.f32 %v49, %v177
    %v179 = vpop.f32.mrb[0].mxu0
    %180 = vdwg.mxu0
    %v181 = vmax.f32 %v173, 0.0
    %v182 = vmax.f32 %v178, 0.0
    %v183 = vld [vmem:[%s3] sm:$0x7]
    %v184 = vld [vmem:[%s4] sm:$0x7]
    %186 = vset.pattern.permute.xlu0 0
    %187 = vperm.xlu0 %186, %v184
    %v188 = vpop.permute.xlu0 %187
    %vm190 = vcmask 130048
    %v192 = vsel %vm190, %v183, 0
    %194 = vmatprep.subr.mxu0 0.0
    %195 = vmatpush1.msra.mxu0 %v181
    %196 = vmatprep.subr.mxu0 0.0
    %197 = vmatpush1.msra.mxu0 %v182
    %198 = vmatprep.subr.mxu0 0.0
    %199 = vmatpush1.msra.mxu0 0.0
    %200 = vmatprep.subr.mxu0 0.0
    %201 = vmatpush1.msra.mxu0 0.0
    %202 = vmatprep.subr.mxu0 0.0
    %203 = vmatpush1.msra.mxu0 0.0
    %204 = vmatprep.subr.mxu0 0.0
    %205 = vmatpush1.msra.mxu0 0.0
    %206 = vmatprep.subr.mxu0 0.0
    %207 = vmatpush1.msra.mxu0 0.0
    %208 = vmatprep.subr.mxu0 0.0
    %209 = vmatpush1.msra.mxu0 0.0
    %210 = vmatprep.subr.mxu0 0.0
    %211 = vmatpush1.msra.mxu0 0.0
    %212 = vmatprep.subr.mxu0 0.0
    %213 = vmatpush1.msra.mxu0 0.0
    %214 = vmatprep.subr.mxu0 0.0
    %215 = vmatpush1.msra.mxu0 0.0
    %216 = vmatprep.subr.mxu0 0.0
    %217 = vmatpush1.msra.mxu0 0.0
    %218 = vmatprep.subr.mxu0 0.0
    %219 = vmatpush1.msra.mxu0 0.0
    %220 = vmatprep.subr.mxu0 0.0
    %221 = vmatpush1.msra.mxu0 0.0
    %222 = vmatprep.subr.mxu0 0.0
    %223 = vmatpush1.msra.mxu0 0.0
    %224 = vmatprep.subr.mxu0 0.0
    %225 = vmatpush1.msra.mxu0 0.0
    %226 = vmatprep.subr.mxu0 0.0
    %227 = vmatpush1.msra.mxu0 0.0
    %228 = vmatprep.subr.mxu0 0.0
    %229 = vmatpush1.msra.mxu0 0.0
    %230 = vmatprep.subr.mxu0 0.0
    %231 = vmatpush1.msra.mxu0 0.0
    %232 = vmatprep.subr.mxu0 0.0
    %233 = vmatpush1.msra.mxu0 0.0
    %234 = vmatprep.subr.mxu0 0.0
    %235 = vmatpush1.msra.mxu0 0.0
    %236 = vmatprep.subr.mxu0 0.0
    %237 = vmatpush1.msra.mxu0 0.0
    %238 = vmatprep.subr.mxu0 0.0
    %239 = vmatpush1.msra.mxu0 0.0
    %240 = vmatprep.subr.mxu0 0.0
    %241 = vmatpush1.msra.mxu0 0.0
    %242 = vmatprep.subr.mxu0 0.0
    %243 = vmatpush1.msra.mxu0 0.0
    %244 = vmatprep.subr.mxu0 0.0
    %245 = vmatpush1.msra.mxu0 0.0
    %246 = vmatprep.subr.mxu0 0.0
    %247 = vmatpush1.msra.mxu0 0.0
    %248 = vmatprep.subr.mxu0 0.0
    %249 = vmatpush1.msra.mxu0 0.0
    %250 = vmatprep.subr.mxu0 0.0
    %251 = vmatpush1.msra.mxu0 0.0
    %252 = vmatprep.subr.mxu0 0.0
    %253 = vmatpush1.msra.mxu0 0.0
    %254 = vmatprep.subr.mxu0 0.0
    %255 = vmatpush1.msra.mxu0 0.0
    %256 = vmatprep.subr.mxu0 0.0
    %257 = vmatpush1.msra.mxu0 0.0
    %258 = vmatprep.mubr.f32.mxu0 0.0
    %259 = vmatmul.mubr.f32.gmra.mrb[0].mxu0 %v192
    %v260 = vpop.f32.mrb[0].mxu0
    %v261 = vadd.f32 %v188, %v260
    %v262 = vpop.f32.mrb[0].mxu0
    %263 = vdwg.mxu0
    %264 = vst [vmem:[#allocation2] sm:$0x7] %v261
    // Predicated region
    $region22: #{tpu_custom_call.1} parent=1 // pred_check
      _
    $region23: #{tpu_custom_call.1} parent=1 // pred_check_branch
      %266 = sbr.rel (0) target = $region25
    $region24: #{tpu_custom_call.1} parent=1 // pred_region
      %s268 = ssub.s32 64, 64
      %269 = vsyncadd [#allocation3], %s268
      %s271 = sshll.u32 [#allocation2], 4
      %s272 = int_to_ptr.vmem [resolvable:$true] %s271
      %274 = dma.vmem_to_hbm [thread:$0]  %s272, 64, %s5, [#allocation3]
    $region25: #{tpu_custom_call.1} parent=1 // pred_fallthru
      _
    // Predicated region
    $region26: #{tpu_custom_call.1} parent=1 // pred_check
      _
    $region27: #{tpu_custom_call.1} parent=1 // pred_check_branch
      %276 = sbr.rel (0) target = $region29
    $region28: #{tpu_custom_call.1} parent=1 // pred_region
      %277 = dma.done [#allocation3], 64
    $region29: #{tpu_custom_call.1} parent=1 // pred_fallthru
      _
    %278 = vsyncpa [#allocation3], 1

</llo_original>
